<compile_context>
chip_gen: v7x
topology: tpu7x:2x2x1
jax: 0.10.0
libtpu: 0.0.40
codegen_flags: <defaults>
</compile_context>

<pallas_src>
import functools

import jax
import jax.numpy as jnp
from jax.experimental import pallas as pl
from jax.experimental.pallas import tpu as pltpu

LANE = 128          # TPU lane width; output is padded to this
TILE_B_MAX = 1024   # batch rows per grid step (multiple of 16, VMEM-safe on all gens)


def _round_up(n: int, m: int) -> int:
    return ((n + m - 1) // m) * m


def mlp_kernel(x_ref, w1_ref, b1_ref, w2_ref, b2_ref, w3_ref, b3_ref, o_ref):
    """One batch tile of the fused 3-layer MLP (all in VMEM)."""
    x = x_ref[...].astype(jnp.bfloat16)                                 # [TB, S]
    # Layer 1: [TB, S] @ [S, 256] -> bias -> ReLU   (f32 accumulation)
    h1 = jnp.dot(x, w1_ref[...], preferred_element_type=jnp.float32)
    h1 = jnp.maximum(h1 + b1_ref[...], 0.0)
    # Layer 2: [TB, 256] @ [256, 128] -> bias -> ReLU
    h2 = jnp.dot(h1.astype(jnp.bfloat16), w2_ref[...],
                 preferred_element_type=jnp.float32)
    h2 = jnp.maximum(h2 + b2_ref[...], 0.0)
    # Layer 3: [TB, 128] @ [128, A_pad] -> bias   (lane-dense A_pad=128 output)
    out = jnp.dot(h2.astype(jnp.bfloat16), w3_ref[...],
                  preferred_element_type=jnp.float32)
    o_ref[...] = out + b3_ref[...]


@functools.partial(jax.jit, static_argnames=())
def mlp_forward(x, params):
    """y = MLP(x). x: [B, S] f32, params: (w1,b1,w2,b2,w3,b3) f32 (weights [in,out])."""
    w1, b1, w2, b2, w3, b3 = params
    B, S = x.shape
    H1 = w1.shape[1]          # 256
    H2 = w2.shape[1]          # 128
    A = w3.shape[1]           # actions_size

    # ---- wrapper-side layout plumbing (done once per call, tiny) ----
    A_pad = _round_up(max(A, 1), LANE)            # lane-dense output width
    TB = min(TILE_B_MAX, _round_up(B, 16))        # batch tile (multiple of 16)
    B_pad = _round_up(B, TB)

    x_p = jnp.pad(x, ((0, B_pad - B), (0, 0)))                      # [B_pad, S]
    w3_p = jnp.pad(w3, ((0, 0), (0, A_pad - A)))                    # [H2, A_pad]
    b3_p = jnp.pad(b3, ((0, 0), (0, A_pad - A)))                    # [1,  A_pad]

    # Weights in bf16 (MXU-native on v6e/v7x, halves weight DMA); biases stay f32.
    w1_b = w1.astype(jnp.bfloat16)
    w2_b = w2.astype(jnp.bfloat16)
    w3_b = w3_p.astype(jnp.bfloat16)

    grid = (B_pad // TB,)

    flops = 2 * B_pad * (S * H1 + H1 * H2 + H2 * A_pad)
    bytes_accessed = (x_p.size * 4 + B_pad * A_pad * 4 +
                      w1_b.size * 2 + w2_b.size * 2 + w3_b.size * 2 +
                      (b1.size + b2.size + b3_p.size) * 4)

    out_padded = pl.pallas_call(
        mlp_kernel,
        out_shape=jax.ShapeDtypeStruct((B_pad, A_pad), jnp.float32),
        grid_spec=pltpu.PrefetchScalarGridSpec(
            num_scalar_prefetch=0,
            grid=grid,
            in_specs=[
                pl.BlockSpec((TB, S), lambda i: (i, 0)),        # x tile (pipelined)
                pl.BlockSpec((S, H1), lambda i: (0, 0)),        # w1 (VMEM-resident)
                pl.BlockSpec((1, H1), lambda i: (0, 0)),        # b1
                pl.BlockSpec((H1, H2), lambda i: (0, 0)),       # w2
                pl.BlockSpec((1, H2), lambda i: (0, 0)),        # b2
                pl.BlockSpec((H2, A_pad), lambda i: (0, 0)),    # w3 (padded)
                pl.BlockSpec((1, A_pad), lambda i: (0, 0)),     # b3 (padded)
            ],
            out_specs=pl.BlockSpec((TB, A_pad), lambda i: (i, 0)),
        ),
        compiler_params=pltpu.CompilerParams(
            dimension_semantics=("parallel",),   # megacore sharding on v7x
        ),
        cost_estimate=pl.CostEstimate(
            flops=flops, transcendentals=0, bytes_accessed=bytes_accessed),
    )(x_p, w1_b, b1, w2_b, b2, w3_b, b3_p)

    return out_padded[:B, :A]


def init_params(key, state_size, actions_size):
    """PyTorch-style uniform(+-1/sqrt(fan_in)) init.

    Weights are stored as [in, out] (torch weight.T); biases as [1, out].
    """
    dims = [(state_size, 256), (256, 128), (128, actions_size)]
    params = []
    for (fan_in, fan_out) in dims:
        key, kw, kb = jax.random.split(key, 3)
        bound = 1.0 / jnp.sqrt(float(fan_in))
        w = jax.random.uniform(kw, (fan_in, fan_out), jnp.float32, -bound, bound)
        b = jax.random.uniform(kb, (1, fan_out), jnp.float32, -bound, bound)
        params += [w, b]
    return tuple(params)


def mlp_reference_f32(x, params):
    w1, b1, w2, b2, w3, b3 = params
    h1 = jnp.maximum(x @ w1 + b1, 0.0)
    h2 = jnp.maximum(h1 @ w2 + b2, 0.0)
    return h2 @ w3 + b3


def mlp_reference_bf16(x, params):
    """Reference that mirrors the kernel's bf16-operand / f32-accumulate dots."""
    w1, b1, w2, b2, w3, b3 = params
    bf = jnp.bfloat16
    h1 = jnp.dot(x.astype(bf), w1.astype(bf), preferred_element_type=jnp.float32)
    h1 = jnp.maximum(h1 + b1, 0.0)
    h2 = jnp.dot(h1.astype(bf), w2.astype(bf), preferred_element_type=jnp.float32)
    h2 = jnp.maximum(h2 + b2, 0.0)
    out = jnp.dot(h2.astype(bf), w3.astype(bf), preferred_element_type=jnp.float32)
    return out + b3


if __name__ == "__main__":
    # LunarLander-v2: state_size=8, actions_size=4; small batch of 8.
    state_size, actions_size, batch = 8, 4, 8

    key = jax.random.PRNGKey(0)
    key, kx = jax.random.split(key)
    x = jax.random.normal(kx, (batch, state_size), jnp.float32)
    params = init_params(key, state_size, actions_size)

    out = mlp_forward(x, params)
    out = jax.block_until_ready(out)
    assert out.shape == (batch, actions_size)

    # Bit-faithful check vs. a reference with the same bf16-operand dots.
    ref_bf16 = mlp_reference_bf16(x, params)
    assert jnp.allclose(out, ref_bf16, atol=1e-3, rtol=1e-3), "mismatch vs bf16 reference"

    # Looser sanity check vs. the pure-f32 PyTorch-equivalent math.
    ref_f32 = mlp_reference_f32(x, params)
    assert jnp.allclose(out, ref_f32, atol=5e-2, rtol=5e-2), "mismatch vs f32 reference"

    print("KERNEL_OK")
</pallas_src>

<mosaic_0001>
module attributes {stable_mosaic.version = 11 : i64} {
  func.func @mlp_kernel(%arg0: i32, %arg1: memref<16x8xf32, #tpu.memory_space<vmem>>, %arg2: memref<8x256xbf16, #tpu.memory_space<vmem>>, %arg3: memref<1x256xf32, #tpu.memory_space<vmem>>, %arg4: memref<256x128xbf16, #tpu.memory_space<vmem>>, %arg5: memref<1x128xf32, #tpu.memory_space<vmem>>, %arg6: memref<128x128xbf16, #tpu.memory_space<vmem>>, %arg7: memref<1x128xf32, #tpu.memory_space<vmem>>, %arg8: memref<16x128xf32, #tpu.memory_space<vmem>>) attributes {dimension_semantics = [#tpu.dimension_semantics<parallel>], iteration_bounds = array<i64: 1>, scalar_prefetch = 0 : i64, scratch_operands = 0 : i64, tpu.core_type = #tpu.core_type<tc>, window_params = [{transform_indices = @transform_0, window_bounds = array<i64: 16, 8>}, {pipeline_mode = #tpu.pipeline_mode<synchronous>, transform_indices = @transform_1, window_bounds = array<i64: 8, 256>}, {pipeline_mode = #tpu.pipeline_mode<synchronous>, transform_indices = @transform_2, window_bounds = array<i64: 1, 256>}, {pipeline_mode = #tpu.pipeline_mode<synchronous>, transform_indices = @transform_3, window_bounds = array<i64: 256, 128>}, {pipeline_mode = #tpu.pipeline_mode<synchronous>, transform_indices = @transform_4, window_bounds = array<i64: 1, 128>}, {pipeline_mode = #tpu.pipeline_mode<synchronous>, transform_indices = @transform_5, window_bounds = array<i64: 128, 128>}, {pipeline_mode = #tpu.pipeline_mode<synchronous>, transform_indices = @transform_6, window_bounds = array<i64: 1, 128>}, {transform_indices = @transform_7, window_bounds = array<i64: 16, 128>}]} {
    %c0 = arith.constant 0 : index
    %c0_0 = arith.constant 0 : index
    %0 = vector.load %arg1[%c0, %c0_0] : memref<16x8xf32, #tpu.memory_space<vmem>>, vector<16x8xf32>
    %1 = arith.truncf %0 : vector<16x8xf32> to vector<16x8xbf16>
    %c0_1 = arith.constant 0 : index
    %c0_2 = arith.constant 0 : index
    %2 = vector.load %arg2[%c0_1, %c0_2] : memref<8x256xbf16, #tpu.memory_space<vmem>>, vector<8x256xbf16>
    %cst = arith.constant dense<0.000000e+00> : vector<16x256xf32>
    %3 = tpu.matmul %1, %2, %cst {dimension_numbers = #tpu.dot_dimension_numbers<[1], [0], [0], [1], [0, 0, 1, 1], [], []>} : vector<16x8xbf16>, vector<8x256xbf16>, vector<16x256xf32> -> vector<16x256xf32>
    %c0_3 = arith.constant 0 : index
    %c0_4 = arith.constant 0 : index
    %4 = vector.load %arg3[%c0_3, %c0_4] : memref<1x256xf32, #tpu.memory_space<vmem>>, vector<1x256xf32>
    %5 = vector.broadcast %4 : vector<1x256xf32> to vector<16x256xf32>
    %6 = arith.addf %3, %5 : vector<16x256xf32>
    %cst_5 = arith.constant 0.000000e+00 : f32
    %7 = vector.broadcast %cst_5 : f32 to vector<16x256xf32>
    %8 = arith.maximumf %6, %7 : vector<16x256xf32>
    %9 = arith.truncf %8 : vector<16x256xf32> to vector<16x256xbf16>
    %c0_6 = arith.constant 0 : index
    %c0_7 = arith.constant 0 : index
    %10 = vector.load %arg4[%c0_6, %c0_7] : memref<256x128xbf16, #tpu.memory_space<vmem>>, vector<256x128xbf16>
    %cst_8 = arith.constant dense<0.000000e+00> : vector<16x128xf32>
    %11 = tpu.matmul %9, %10, %cst_8 {dimension_numbers = #tpu.dot_dimension_numbers<[1], [0], [0], [1], [0, 0, 1, 1], [], []>} : vector<16x256xbf16>, vector<256x128xbf16>, vector<16x128xf32> -> vector<16x128xf32>
    %c0_9 = arith.constant 0 : index
    %c0_10 = arith.constant 0 : index
    %12 = vector.load %arg5[%c0_9, %c0_10] : memref<1x128xf32, #tpu.memory_space<vmem>>, vector<1x128xf32>
    %13 = vector.broadcast %12 : vector<1x128xf32> to vector<16x128xf32>
    %14 = arith.addf %11, %13 : vector<16x128xf32>
    %cst_11 = arith.constant 0.000000e+00 : f32
    %15 = vector.broadcast %cst_11 : f32 to vector<16x128xf32>
    %16 = arith.maximumf %14, %15 : vector<16x128xf32>
    %17 = arith.truncf %16 : vector<16x128xf32> to vector<16x128xbf16>
    %c0_12 = arith.constant 0 : index
    %c0_13 = arith.constant 0 : index
    %18 = vector.load %arg6[%c0_12, %c0_13] : memref<128x128xbf16, #tpu.memory_space<vmem>>, vector<128x128xbf16>
    %cst_14 = arith.constant dense<0.000000e+00> : vector<16x128xf32>
    %19 = tpu.matmul %17, %18, %cst_14 {dimension_numbers = #tpu.dot_dimension_numbers<[1], [0], [0], [1], [0, 0, 1, 1], [], []>} : vector<16x128xbf16>, vector<128x128xbf16>, vector<16x128xf32> -> vector<16x128xf32>
    %c0_15 = arith.constant 0 : index
    %c0_16 = arith.constant 0 : index
    %20 = vector.load %arg7[%c0_15, %c0_16] : memref<1x128xf32, #tpu.memory_space<vmem>>, vector<1x128xf32>
    %21 = vector.broadcast %20 : vector<1x128xf32> to vector<16x128xf32>
    %22 = arith.addf %19, %21 : vector<16x128xf32>
    %c0_17 = arith.constant 0 : index
    %c0_18 = arith.constant 0 : index
    %23 = vector.load %arg8[%c0_17, %c0_18] : memref<16x128xf32, #tpu.memory_space<vmem>>, vector<16x128xf32>
    tpu.vector_store %arg8[%c0_17, %c0_18], %22 {strides = array<i32>} : memref<16x128xf32, #tpu.memory_space<vmem>>, vector<16x128xf32>,
    return
  }
  func.func @transform_0(%arg0: i32) -> (i32, i32) {
    %c0_i32 = arith.constant 0 : i32
    %c0_i32_0 = arith.constant 0 : i32
    return %arg0, %c0_i32 : i32, i32
  }
  func.func @transform_1(%arg0: i32) -> (i32, i32) {
    %c0_i32 = arith.constant 0 : i32
    %c0_i32_0 = arith.constant 0 : i32
    %c0_i32_1 = arith.constant 0 : i32
    return %c0_i32, %c0_i32_0 : i32, i32
  }
  func.func @transform_2(%arg0: i32) -> (i32, i32) {
    %c0_i32 = arith.constant 0 : i32
    %c0_i32_0 = arith.constant 0 : i32
    %c0_i32_1 = arith.constant 0 : i32
    return %c0_i32, %c0_i32_0 : i32, i32
  }
  func.func @transform_3(%arg0: i32) -> (i32, i32) {
    %c0_i32 = arith.constant 0 : i32
    %c0_i32_0 = arith.constant 0 : i32
    %c0_i32_1 = arith.constant 0 : i32
    return %c0_i32, %c0_i32_0 : i32, i32
  }
  func.func @transform_4(%arg0: i32) -> (i32, i32) {
    %c0_i32 = arith.constant 0 : i32
    %c0_i32_0 = arith.constant 0 : i32
    %c0_i32_1 = arith.constant 0 : i32
    return %c0_i32, %c0_i32_0 : i32, i32
  }
  func.func @transform_5(%arg0: i32) -> (i32, i32) {
    %c0_i32 = arith.constant 0 : i32
    %c0_i32_0 = arith.constant 0 : i32
    %c0_i32_1 = arith.constant 0 : i32
    return %c0_i32, %c0_i32_0 : i32, i32
  }
  func.func @transform_6(%arg0: i32) -> (i32, i32) {
    %c0_i32 = arith.constant 0 : i32
    %c0_i32_0 = arith.constant 0 : i32
    %c0_i32_1 = arith.constant 0 : i32
    return %c0_i32, %c0_i32_0 : i32, i32
  }
  func.func @transform_7(%arg0: i32) -> (i32, i32) {
    %c0_i32 = arith.constant 0 : i32
    %c0_i32_0 = arith.constant 0 : i32
    return %arg0, %c0_i32 : i32, i32
  }
}

</mosaic_0001>

<llo_original>
// kernel: mlp_forward.1
$region0: #{mlp_forward.1}
  #allocation0 [shape = 'u32[]', space=smem, size = 0x4, offset = 0x4, fixed_abs, tag = 'smem constant byte address 0x4 - core index']
  #allocation1 [shape = 'u32[144,128]{1,0:T(1,128)}', space=vmem, size = 0x12000, scoped, tag = 'internal scratch']
  %s0 = inlined_call_operand.vmem [shape: f32[16,8], index: 0, kind: input, shape index: {}]
  %s1 = inlined_call_operand.vmem [shape: bf16[8,256], index: 1, kind: input, shape index: {}]
  %s2 = inlined_call_operand.vmem [shape: f32[1,256], index: 2, kind: input, shape index: {}]
  %s3 = inlined_call_operand.vmem [shape: bf16[256,128], index: 3, kind: input, shape index: {}]
  %s4 = inlined_call_operand.vmem [shape: f32[1,128], index: 4, kind: input, shape index: {}]
  %s5 = inlined_call_operand.vmem [shape: bf16[128,128], index: 5, kind: input, shape index: {}]
  %s6 = inlined_call_operand.vmem [shape: f32[1,128], index: 6, kind: input, shape index: {}]
  %s7 = inlined_call_operand.vmem [shape: f32[16,128], index: 7, kind: output, shape index: {}]
  %s8 = sld [smem:[#allocation0]]
  $region38: #{mlp_forward.1} parent=0
    _
  %s10 = ssub.s32 1, %s8
  %s11 = scalar_select 0, %s10, %s8
  // Predicated region
  $region2: #{mlp_forward.1} parent=0 // pred_check
    _
  $region3: #{mlp_forward.1} parent=0 // pred_check_branch
    %13 = sbr.rel (0) target = $region5
  $region4: #{mlp_forward.1} parent=0 // pred_region
    _
  $region5: #{mlp_forward.1} parent=0 // pred_fallthru
    _
  // Predicated region
  $region6: #{mlp_forward.1} parent=0 // pred_check
    _
  $region7: #{mlp_forward.1} parent=0 // pred_check_branch
    %15 = sbr.rel (0) target = $region9
  $region8: #{mlp_forward.1} parent=0 // pred_region
    _
  $region9: #{mlp_forward.1} parent=0 // pred_fallthru
    _
  // Predicated region
  $region10: #{mlp_forward.1} parent=0 // pred_check
    _
  $region11: #{mlp_forward.1} parent=0 // pred_check_branch
    %17 = sbr.rel (0) target = $region13
  $region12: #{mlp_forward.1} parent=0 // pred_region
    _
  $region13: #{mlp_forward.1} parent=0 // pred_fallthru
    _
  // Predicated region
  $region14: #{mlp_forward.1} parent=0 // pred_check
    _
  $region15: #{mlp_forward.1} parent=0 // pred_check_branch
    %19 = sbr.rel (0) target = $region17
  $region16: #{mlp_forward.1} parent=0 // pred_region
    _
  $region17: #{mlp_forward.1} parent=0 // pred_fallthru
    _
  // Predicated region
  $region18: #{mlp_forward.1} parent=0 // pred_check
    _
  $region19: #{mlp_forward.1} parent=0 // pred_check_branch
    %21 = sbr.rel (0) target = $region21
  $region20: #{mlp_forward.1} parent=0 // pred_region
    _
  $region21: #{mlp_forward.1} parent=0 // pred_fallthru
    _
  // Predicated region
  $region22: #{mlp_forward.1} parent=0 // pred_check
    _
  $region23: #{mlp_forward.1} parent=0 // pred_check_branch
    %23 = sbr.rel (0) target = $region25
  $region24: #{mlp_forward.1} parent=0 // pred_region
    _
  $region25: #{mlp_forward.1} parent=0 // pred_fallthru
    _
  // Predicated region
  $region26: #{mlp_forward.1} parent=0 // pred_check
    _
  $region27: #{mlp_forward.1} parent=0 // pred_check_branch
    %25 = sbr.rel (0) target = $region29
  $region28: #{mlp_forward.1} parent=0 // pred_region
    _
  $region29: #{mlp_forward.1} parent=0 // pred_fallthru
    _
  %v27 = vld [vmem:[%s0] sm:$0xff]
  %v28 = vld [vmem:[%s0 + $0x8] sm:$0xff]
  %v29 = vpack.c.bf16 %v28, %v27
  %v30 = vld [vmem:[%s1] sm:$0xff]
  %v31 = vld [vmem:[%s2] sm:$0x3]
  %v33 = vlaneseq
  %v34 = vshrl.u32 %v33, 7
  %v35 = vsub.s32 0, %v34
  %v36 = vrot.slane %v31, %v35
  %v37 = vlaneseq
  %v38 = vshrl.u32 %v37, 7
  %v39 = vsub.s32 1, %v38
  %v40 = vrot.slane %v31, %v39
  %v44 = vunpack.c.l.b16 %v30
  %v45 = vunpack.c.h.b16 %v30
  %v46 = vpack.c.b16 %v44, %v44
  %v47 = vpack.c.b16 %v45, %v45
  %vm48 = vcmask 64512
  %v50 = vsel %vm48, %v29, 0
  %vm52 = vcmask 1043456
  %v54 = vsel %vm52, %v46, 0
  %v57 = vsel %vm52, %v47, 0
  %59 = vmatprep.subr.bf16.mxu0 %v57
  %60 = vmatpush1.bf16.msra.mxu0 %v54
  %61 = vmatprep.subr.bf16.mxu0 0
  %62 = vmatpush1.bf16.msra.mxu0 0
  %63 = vmatprep.subr.bf16.mxu0 0
  %64 = vmatpush1.bf16.msra.mxu0 0
  %65 = vmatprep.subr.bf16.mxu0 0
  %66 = vmatpush1.bf16.msra.mxu0 0
  %67 = vmatprep.subr.bf16.mxu0 0
  %68 = vmatpush1.bf16.msra.mxu0 0
  %69 = vmatprep.subr.bf16.mxu0 0
  %70 = vmatpush1.bf16.msra.mxu0 0
  %71 = vmatprep.subr.bf16.mxu0 0
  %72 = vmatpush1.bf16.msra.mxu0 0
  %73 = vmatprep.subr.bf16.mxu0 0
  %74 = vmatpush1.bf16.msra.mxu0 0
  %75 = vmatprep.subr.bf16.mxu0 0
  %76 = vmatpush1.bf16.msra.mxu0 0
  %77 = vmatprep.subr.bf16.mxu0 0
  %78 = vmatpush1.bf16.msra.mxu0 0
  %79 = vmatprep.subr.bf16.mxu0 0
  %80 = vmatpush1.bf16.msra.mxu0 0
  %81 = vmatprep.subr.bf16.mxu0 0
  %82 = vmatpush1.bf16.msra.mxu0 0
  %83 = vmatprep.subr.bf16.mxu0 0
  %84 = vmatpush1.bf16.msra.mxu0 0
  %85 = vmatprep.subr.bf16.mxu0 0
  %86 = vmatpush1.bf16.msra.mxu0 0
  %87 = vmatprep.subr.bf16.mxu0 0
  %88 = vmatpush1.bf16.msra.mxu0 0
  %89 = vmatprep.subr.bf16.mxu0 0
  %90 = vmatpush1.bf16.msra.mxu0 0
  %91 = vmatprep.mubr.bf16.mxu0 0
  %92 = vmatmul.mubr.bf16.gmra.mrb[0].mxu0 %v50
  %v93 = vpop.f32.mrb[0].mxu0
  %v94 = vadd.f32 %v36, %v93
  %v95 = vpop.f32.mrb[0].mxu0
  %v96 = vadd.f32 %v40, %v95
  %v97 = vpop.f32.mrb[0].mxu0
  %v98 = vadd.f32 %v36, %v97
  %v99 = vpop.f32.mrb[0].mxu0
  %v100 = vadd.f32 %v40, %v99
  %101 = vdwg.mxu0
  %v102 = vmax.f32 %v94, 0.0
  %v103 = vmax.f32 %v96, 0.0
  %v104 = vmax.f32 %v98, 0.0
  %v105 = vmax.f32 %v100, 0.0
  %v106 = vpack.c.bf16 %v104, %v102
  %v107 = vpack.c.bf16 %v105, %v103
  %v108 = vld [vmem:[%s3] sm:$0xf]
  %v109 = vld [vmem:[%s3 + $0x4] sm:$0xf]
  %v110 = vld [vmem:[%s3 + $0x8] sm:$0xf]
  %v111 = vld [vmem:[%s3 + $0xc] sm:$0xf]
  %v112 = vld [vmem:[%s3 + $0x10] sm:$0xf]
  %v113 = vld [vmem:[%s3 + $0x14] sm:$0xf]
  %v114 = vld [vmem:[%s3 + $0x18] sm:$0xf]
  %v115 = vld [vmem:[%s3 + $0x1c] sm:$0xf]
  %v116 = vld [vmem:[%s3 + $0x20] sm:$0xf]
  %v117 = vld [vmem:[%s3 + $0x24] sm:$0xf]
  %v118 = vld [vmem:[%s3 + $0x28] sm:$0xf]
  %v119 = vld [vmem:[%s3 + $0x2c] sm:$0xf]
  %v120 = vld [vmem:[%s3 + $0x30] sm:$0xf]
  %v121 = vld [vmem:[%s3 + $0x34] sm:$0xf]
  %v122 = vld [vmem:[%s3 + $0x38] sm:$0xf]
  %v123 = vld [vmem:[%s3 + $0x3c] sm:$0xf]
  %v124 = vld [vmem:[%s3 + $0x40] sm:$0xf]
  %v125 = vld [vmem:[%s3 + $0x44] sm:$0xf]
  %v126 = vld [vmem:[%s3 + $0x48] sm:$0xf]
  %v127 = vld [vmem:[%s3 + $0x4c] sm:$0xf]
  %v128 = vld [vmem:[%s3 + $0x50] sm:$0xf]
  %v129 = vld [vmem:[%s3 + $0x54] sm:$0xf]
  %v130 = vld [vmem:[%s3 + $0x58] sm:$0xf]
  %v131 = vld [vmem:[%s3 + $0x5c] sm:$0xf]
  %v132 = vld [vmem:[%s3 + $0x60] sm:$0xf]
  %v133 = vld [vmem:[%s3 + $0x64] sm:$0xf]
  %v134 = vld [vmem:[%s3 + $0x68] sm:$0xf]
  %v135 = vld [vmem:[%s3 + $0x6c] sm:$0xf]
  %v136 = vld [vmem:[%s3 + $0x70] sm:$0xf]
  %v137 = vld [vmem:[%s3 + $0x74] sm:$0xf]
  %v138 = vld [vmem:[%s3 + $0x78] sm:$0xf]
  %v139 = vld [vmem:[%s3 + $0x7c] sm:$0xf]
  %v140 = vld [vmem:[%s4] sm:$0x1]
  %v142 = vlaneseq
  %v143 = vshrl.u32 %v142, 7
  %v144 = vsub.s32 0, %v143
  %v145 = vrot.slane %v140, %v144
  %v179 = vunpack.c.l.b16 %v108
  %v180 = vunpack.c.l.b16 %v109
  %v181 = vunpack.c.l.b16 %v110
  %v182 = vunpack.c.l.b16 %v111
  %v183 = vunpack.c.l.b16 %v112
  %v184 = vunpack.c.l.b16 %v113
  %v185 = vunpack.c.l.b16 %v114
  %v186 = vunpack.c.l.b16 %v115
  %v187 = vunpack.c.l.b16 %v116
  %v188 = vunpack.c.l.b16 %v117
  %v189 = vunpack.c.l.b16 %v118
  %v190 = vunpack.c.l.b16 %v119
  %v191 = vunpack.c.l.b16 %v120
  %v192 = vunpack.c.l.b16 %v121
  %v193 = vunpack.c.l.b16 %v122
  %v194 = vunpack.c.l.b16 %v123
  %v195 = vunpack.c.l.b16 %v124
  %v196 = vunpack.c.l.b16 %v125
  %v197 = vunpack.c.l.b16 %v126
  %v198 = vunpack.c.l.b16 %v127
  %v199 = vunpack.c.l.b16 %v128
  %v200 = vunpack.c.l.b16 %v129
  %v201 = vunpack.c.l.b16 %v130
  %v202 = vunpack.c.l.b16 %v131
  %v203 = vunpack.c.l.b16 %v132
  %v204 = vunpack.c.l.b16 %v133
  %v205 = vunpack.c.l.b16 %v134
  %v206 = vunpack.c.l.b16 %v135
  %v207 = vunpack.c.l.b16 %v136
  %v208 = vunpack.c.l.b16 %v137
  %v209 = vunpack.c.l.b16 %v138
  %v210 = vunpack.c.l.b16 %v139
  %v211 = vpack.c.b16 %v180, %v179
  %v212 = vpack.c.b16 %v182, %v181
  %v213 = vpack.c.b16 %v184, %v183
  %v214 = vpack.c.b16 %v186, %v185
  %v215 = vpack.c.b16 %v188, %v187
  %v216 = vpack.c.b16 %v190, %v189
  %v217 = vpack.c.b16 %v192, %v191
  %v218 = vpack.c.b16 %v194, %v193
  %v219 = vpack.c.b16 %v196, %v195
  %v220 = vpack.c.b16 %v198, %v197
  %v221 = vpack.c.b16 %v200, %v199
  %v222 = vpack.c.b16 %v202, %v201
  %v223 = vpack.c.b16 %v204, %v203
  %v224 = vpack.c.b16 %v206, %v205
  %v225 = vpack.c.b16 %v208, %v207
  %v226 = vpack.c.b16 %v210, %v209
  %243 = vmatprep.subr.bf16.mxu0 0
  %244 = vmatpush1.bf16.msra.mxu0 %v211
  %245 = vmatprep.subr.bf16.mxu0 0
  %246 = vmatpush1.bf16.msra.mxu0 %v212
  %247 = vmatprep.subr.bf16.mxu0 0
  %248 = vmatpush1.bf16.msra.mxu0 %v213
  %249 = vmatprep.subr.bf16.mxu0 0
  %250 = vmatpush1.bf16.msra.mxu0 %v214
  %251 = vmatprep.subr.bf16.mxu0 0
  %252 = vmatpush1.bf16.msra.mxu0 %v215
  %253 = vmatprep.subr.bf16.mxu0 0
  %254 = vmatpush1.bf16.msra.mxu0 %v216
  %255 = vmatprep.subr.bf16.mxu0 0
  %256 = vmatpush1.bf16.msra.mxu0 %v217
  %257 = vmatprep.subr.bf16.mxu0 0
  %258 = vmatpush1.bf16.msra.mxu0 %v218
  %259 = vmatprep.subr.bf16.mxu0 0
  %260 = vmatpush1.bf16.msra.mxu0 %v219
  %261 = vmatprep.subr.bf16.mxu0 0
  %262 = vmatpush1.bf16.msra.mxu0 %v220
  %263 = vmatprep.subr.bf16.mxu0 0
  %264 = vmatpush1.bf16.msra.mxu0 %v221
  %265 = vmatprep.subr.bf16.mxu0 0
  %266 = vmatpush1.bf16.msra.mxu0 %v222
  %267 = vmatprep.subr.bf16.mxu0 0
  %268 = vmatpush1.bf16.msra.mxu0 %v223
  %269 = vmatprep.subr.bf16.mxu0 0
  %270 = vmatpush1.bf16.msra.mxu0 %v224
  %271 = vmatprep.subr.bf16.mxu0 0
  %272 = vmatpush1.bf16.msra.mxu0 %v225
  %273 = vmatprep.subr.bf16.mxu0 0
  %274 = vmatpush1.bf16.msra.mxu0 %v226
  %275 = vmatprep.mubr.bf16.mxu0 %v107
  %276 = vmatmul.mubr.bf16.gmra.mrb[0].mxu0 %v106
  %v277 = vpop.f32.mrb[0].mxu0
  %v278 = vadd.f32 %v145, %v277
  %v279 = vpop.f32.mrb[0].mxu0
  %v280 = vpop.f32.mrb[0].mxu0
  %v281 = vadd.f32 %v145, %v280
  %v282 = vpop.f32.mrb[0].mxu0
  %283 = vdwg.mxu0
  %v284 = vmax.f32 %v278, 0.0
  %v285 = vmax.f32 %v281, 0.0
  %v286 = vpack.c.bf16 %v285, %v284
  %v287 = vld [vmem:[%s5] sm:$0xf]
  %v288 = vld [vmem:[%s5 + $0x4] sm:$0xf]
  %v289 = vld [vmem:[%s5 + $0x8] sm:$0xf]
  %v290 = vld [vmem:[%s5 + $0xc] sm:$0xf]
  %v291 = vld [vmem:[%s5 + $0x10] sm:$0xf]
  %v292 = vld [vmem:[%s5 + $0x14] sm:$0xf]
  %v293 = vld [vmem:[%s5 + $0x18] sm:$0xf]
  %v294 = vld [vmem:[%s5 + $0x1c] sm:$0xf]
  %v295 = vld [vmem:[%s5 + $0x20] sm:$0xf]
  %v296 = vld [vmem:[%s5 + $0x24] sm:$0xf]
  %v297 = vld [vmem:[%s5 + $0x28] sm:$0xf]
  %v298 = vld [vmem:[%s5 + $0x2c] sm:$0xf]
  %v299 = vld [vmem:[%s5 + $0x30] sm:$0xf]
  %v300 = vld [vmem:[%s5 + $0x34] sm:$0xf]
  %v301 = vld [vmem:[%s5 + $0x38] sm:$0xf]
  %v302 = vld [vmem:[%s5 + $0x3c] sm:$0xf]
  %v303 = vld [vmem:[%s6] sm:$0x1]
  %v305 = vlaneseq
  %v306 = vshrl.u32 %v305, 7
  %v307 = vsub.s32 0, %v306
  %v308 = vrot.slane %v303, %v307
  %v326 = vunpack.c.l.b16 %v287
  %v327 = vunpack.c.l.b16 %v288
  %v328 = vunpack.c.l.b16 %v289
  %v329 = vunpack.c.l.b16 %v290
  %v330 = vunpack.c.l.b16 %v291
  %v331 = vunpack.c.l.b16 %v292
  %v332 = vunpack.c.l.b16 %v293
  %v333 = vunpack.c.l.b16 %v294
  %v334 = vunpack.c.l.b16 %v295
  %v335 = vunpack.c.l.b16 %v296
  %v336 = vunpack.c.l.b16 %v297
  %v337 = vunpack.c.l.b16 %v298
  %v338 = vunpack.c.l.b16 %v299
  %v339 = vunpack.c.l.b16 %v300
  %v340 = vunpack.c.l.b16 %v301
  %v341 = vunpack.c.l.b16 %v302
  %v342 = vpack.c.b16 %v327, %v326
  %v343 = vpack.c.b16 %v329, %v328
  %v344 = vpack.c.b16 %v331, %v330
  %v345 = vpack.c.b16 %v333, %v332
  %v346 = vpack.c.b16 %v335, %v334
  %v347 = vpack.c.b16 %v337, %v336
  %v348 = vpack.c.b16 %v339, %v338
  %v349 = vpack.c.b16 %v341, %v340
  %358 = vmatprep.subr.bf16.mxu0 0
  %359 = vmatpush1.bf16.msra.mxu0 %v342
  %360 = vmatprep.subr.bf16.mxu0 0
  %361 = vmatpush1.bf16.msra.mxu0 %v343
  %362 = vmatprep.subr.bf16.mxu0 0
  %363 = vmatpush1.bf16.msra.mxu0 %v344
  %364 = vmatprep.subr.bf16.mxu0 0
  %365 = vmatpush1.bf16.msra.mxu0 %v345
  %366 = vmatprep.subr.bf16.mxu0 0
  %367 = vmatpush1.bf16.msra.mxu0 %v346
  %368 = vmatprep.subr.bf16.mxu0 0
  %369 = vmatpush1.bf16.msra.mxu0 %v347
  %370 = vmatprep.subr.bf16.mxu0 0
  %371 = vmatpush1.bf16.msra.mxu0 %v348
  %372 = vmatprep.subr.bf16.mxu0 0
  %373 = vmatpush1.bf16.msra.mxu0 %v349
  %374 = vmatprep.subr.bf16.mxu0 0
  %375 = vmatpush1.bf16.msra.mxu0 0
  %376 = vmatprep.subr.bf16.mxu0 0
  %377 = vmatpush1.bf16.msra.mxu0 0
  %378 = vmatprep.subr.bf16.mxu0 0
  %379 = vmatpush1.bf16.msra.mxu0 0
  %380 = vmatprep.subr.bf16.mxu0 0
  %381 = vmatpush1.bf16.msra.mxu0 0
  %382 = vmatprep.subr.bf16.mxu0 0
  %383 = vmatpush1.bf16.msra.mxu0 0
  %384 = vmatprep.subr.bf16.mxu0 0
  %385 = vmatpush1.bf16.msra.mxu0 0
  %386 = vmatprep.subr.bf16.mxu0 0
  %387 = vmatpush1.bf16.msra.mxu0 0
  %388 = vmatprep.subr.bf16.mxu0 0
  %389 = vmatpush1.bf16.msra.mxu0 0
  %390 = vmatprep.mubr.bf16.mxu0 0
  %391 = vmatmul.mubr.bf16.gmra.mrb[0].mxu0 %v286
  %v392 = vpop.f32.mrb[0].mxu0
  %v393 = vadd.f32 %v308, %v392
  %v394 = vpop.f32.mrb[0].mxu0
  %v395 = vpop.f32.mrb[0].mxu0
  %v396 = vadd.f32 %v308, %v395
  %v397 = vpop.f32.mrb[0].mxu0
  %398 = vdwg.mxu0
  %399 = vst [vmem:[%s7] sm:$0xff] %v393
  %400 = vst [vmem:[%s7 + $0x8] sm:$0xff] %v396
  // Predicated region
  $region30: #{mlp_forward.1} parent=0 // pred_check
    _
  $region31: #{mlp_forward.1} parent=0 // pred_check_branch
    %402 = sbr.rel (0) target = $region33
  $region32: #{mlp_forward.1} parent=0 // pred_region
    _
  $region33: #{mlp_forward.1} parent=0 // pred_fallthru
    _
  // Predicated region
  $region34: #{mlp_forward.1} parent=0 // pred_check
    _
  $region35: #{mlp_forward.1} parent=0 // pred_check_branch
    %404 = sbr.rel (0) target = $region37
  $region36: #{mlp_forward.1} parent=0 // pred_region
    _
  $region37: #{mlp_forward.1} parent=0 // pred_fallthru
    _

</llo_original>
